<compile_context>
chip_gen: v6e
topology: v6e:2x2x1
jax: 0.10.0
libtpu: 0.0.40
codegen_flags: <defaults>
</compile_context>

<pallas_src>
import functools

import jax
import jax.numpy as jnp
import numpy as np
from jax.experimental import pallas as pl
from jax.experimental.pallas import tpu as pltpu


def _attention_kernel(hid_ref, enc_ref, wht_ref, wet_ref, b_ref, v_ref, out_ref,
                      *, bf16_nonlin):
    # hid_ref : (TB, H)      bf16 hidden states for this batch tile
    # enc_ref : (TB*S, H)    bf16 encoder outputs for this batch tile (2D, contiguous)
    # wht_ref : (H, Hp)      bf16 = pad(W_attn[:, :H].T)  (applied to hidden)
    # wet_ref : (H, Hp)      bf16 = pad(W_attn[:, H:].T)  (applied to enc_out)
    # b_ref   : (1, Hp)      f32 zero-padded attn bias
    # v_ref   : (1, Hp)      f32 zero-padded v weight row
    # out_ref : (TB, S)      f32 softmax attention weights
    TB, H = hid_ref.shape
    S = out_ref.shape[1]
    Hp = wht_ref.shape[1]

    hid = hid_ref[...]                                   # (TB, H)
    enc2d = enc_ref[...]                                 # (TB*S, H), already 2D

    # Linear(2H -> H) on cat([h, enc]) split into two MXU matmuls, f32 accum.
    e_h = jnp.dot(hid, wht_ref[...], preferred_element_type=jnp.float32)      # (TB, Hp)
    e_e = jnp.dot(enc2d, wet_ref[...], preferred_element_type=jnp.float32)    # (TB*S, Hp)

    # Fold the bias into the small per-batch term once (TBxHp, not TBxSxHp).
    eh_b = e_h + b_ref[...]                               # (TB, Hp)

    # Value-level reshape only: lane dim (Hp=128) unchanged -> layout-identical.
    pre = e_e.reshape(TB, S, Hp) + eh_b[:, None, :]       # (TB, S, Hp) f32

    if bf16_nonlin:
        # v6e/v7x: bf16 packs 2 elems/lane through the EUP tanh + VPU multiply.
        energy = jnp.tanh(pre.astype(jnp.bfloat16))                           # (TB, S, Hp) bf16
        prod = energy * v_ref[...].astype(jnp.bfloat16)                       # (TB, S, Hp) bf16
        scores = jnp.sum(prod, axis=-1, dtype=jnp.float32)                    # (TB, S) f32
    else:
        # v5e: no bf16 VPU/EUP -> keep f32 math.
        energy = jnp.tanh(pre)                                                # (TB, S, Hp) f32
        scores = jnp.sum(energy * v_ref[...], axis=-1)                        # (TB, S) f32

    # softmax over S (lane axis -> XLU reduce); EUP approx reciprocal.
    m = jnp.max(scores, axis=-1, keepdims=True)                               # (TB, 1)
    p = jnp.exp(scores - m)
    denom = jnp.sum(p, axis=-1, keepdims=True)
    out_ref[...] = (p * pl.reciprocal(denom, approx=True)).astype(out_ref.dtype)


def _bf16_nonlin_ok():
    """bf16 tanh/VPU path only on v6e/v7x; v5e (and unknown) keeps f32."""
    try:
        kind = jax.devices()[0].device_kind.lower()
    except Exception:
        return False
    return ("v6" in kind) or ("v7" in kind)


def attention_forward(hidden, enc_out, w_attn, b_attn, w_v, *, block_b=None):
    """hidden: (1, B, H), enc_out: (B, S, H). Returns (B, S) softmax weights."""
    B, S, H = enc_out.shape

    # --- wrapper-side prep (glue only) -------------------------------------
    hid2d = jnp.reshape(hidden, (B, H)).astype(jnp.bfloat16)        # squeeze(0)
    enc2d = jnp.reshape(enc_out, (B * S, H)).astype(jnp.bfloat16)   # flatten to 2D

    # Zero-pad the attn-Linear OUTPUT dim to full 128-lane vregs.  Only the
    # weights / bias / v row are padded, so the result is exact and enc_out
    # HBM traffic is unchanged.
    Hp = max(128, ((H + 127) // 128) * 128)
    wht = jnp.zeros((H, Hp), jnp.bfloat16).at[:, :H].set(
        jnp.transpose(w_attn[:, :H]).astype(jnp.bfloat16))           # (H, Hp)
    wet = jnp.zeros((H, Hp), jnp.bfloat16).at[:, :H].set(
        jnp.transpose(w_attn[:, H:]).astype(jnp.bfloat16))           # (H, Hp)
    b2d = jnp.zeros((1, Hp), jnp.float32).at[:, :H].set(
        jnp.reshape(b_attn, (1, H)).astype(jnp.float32))             # (1, Hp)
    vrow = jnp.zeros((1, Hp), jnp.float32).at[:, :H].set(
        jnp.reshape(w_v, (1, H)).astype(jnp.float32))                # (1, Hp)

    # --- tile-size derivation from the REAL live set -----------------------
    # Per batch element (worst case, f32 intermediates):
    #   double-buffered bf16 enc block  : 2 * S*H*2
    #   double-buffered bf16 hid block  : 2 * H*2
    #   f32 e_e + pre + energy          : 3 * S*Hp*4
    #   double-buffered f32 out + scores: ~4 * S*4
    per_elem = 2 * S * H * 2 + 2 * H * 2 + 3 * S * Hp * 4 + 4 * S * 4
    weights_bytes = 2 * (2 * H * Hp * 2 + 2 * Hp * 4)                # double-buffered params
    if block_b is None:
        budget = 8 * 1024 * 1024                                     # fits v5e/v6e/v7x scoped VMEM
        block_b = (budget // max(1, per_elem)) // 16 * 16            # bf16 sublane tile = 16
        block_b = max(16, min(256, block_b))
        if B >= 32:
            # keep grid_b >= 2 so "parallel" batch axis can use both v7x TCs
            block_b = min(block_b, max(16, ((B + 1) // 2) // 16 * 16))
        block_b = min(block_b, max(16, pl.cdiv(B, 16) * 16))         # don't exceed (padded) batch
    grid_b = pl.cdiv(B, block_b)
    Bp = grid_b * block_b
    if Bp != B:                                        # pad batch to a tile multiple
        hid2d = jnp.pad(hid2d, ((0, Bp - B), (0, 0)))
        enc2d = jnp.pad(enc2d, ((0, (Bp - B) * S), (0, 0)))

    vmem_limit = int(min(48 * 1024 * 1024,
                         max(32 * 1024 * 1024, 2 * (block_b * per_elem + weights_bytes))))

    kernel = functools.partial(_attention_kernel, bf16_nonlin=_bf16_nonlin_ok())

    out = pl.pallas_call(
        kernel,
        out_shape=jax.ShapeDtypeStruct((Bp, S), jnp.float32),
        grid_spec=pltpu.PrefetchScalarGridSpec(
            num_scalar_prefetch=0,
            grid=(grid_b,),
            in_specs=[
                pl.BlockSpec((block_b, H), lambda b: (b, 0)),        # hidden
                pl.BlockSpec((block_b * S, H), lambda b: (b, 0)),    # enc_out (2D, contiguous)
                pl.BlockSpec((H, Hp), lambda b: (0, 0)),             # W_attn[:, :H].T (padded)
                pl.BlockSpec((H, Hp), lambda b: (0, 0)),             # W_attn[:, H:].T (padded)
                pl.BlockSpec((1, Hp), lambda b: (0, 0)),             # bias (padded)
                pl.BlockSpec((1, Hp), lambda b: (0, 0)),             # v row (padded)
            ],
            out_specs=pl.BlockSpec((block_b, S), lambda b: (b, 0)),  # scores
        ),
        compiler_params=pltpu.CompilerParams(
            dimension_semantics=("parallel",),
            vmem_limit_bytes=vmem_limit),
    )(hid2d, enc2d, wht, wet, b2d, vrow)

    return out[:B]                                                   # (B, S)


def attention_reference(hidden, enc_out, w_attn, b_attn, w_v):
    """Pure-JAX f32 reference matching the PyTorch forward exactly."""
    B, S, H = enc_out.shape
    h = jnp.repeat(jnp.reshape(hidden, (B, 1, H)), S, axis=1)        # (B, S, H)
    cat = jnp.concatenate([h, enc_out], axis=2)                      # (B, S, 2H)
    energy = jnp.tanh(jnp.einsum("bsk,hk->bsh", cat, w_attn) + b_attn)
    scores = jnp.einsum("bsh,oh->bso", energy, w_v)[..., 0]          # (B, S)
    return jax.nn.softmax(scores, axis=1)


if __name__ == "__main__":
    B, S, H = 2, 8, 32

    key = jax.random.PRNGKey(0)
    k1, k2, k3, k4, k5 = jax.random.split(key, 5)

    # Deterministic synthetic parameters (PyTorch Linear shapes).
    w_attn = jax.random.uniform(k1, (H, 2 * H), jnp.float32, -0.1, 0.1)  # attn.weight
    b_attn = jax.random.uniform(k2, (H,), jnp.float32, -0.1, 0.1)        # attn.bias
    w_v = jax.random.uniform(k3, (1, H), jnp.float32, -0.1, 0.1)         # v.weight

    # Inputs: hidden (1, B, H), enc_out (B, S, H)
    hidden = jax.random.normal(k4, (1, B, H), jnp.float32)
    enc_out = jax.random.normal(k5, (B, S, H), jnp.float32)

    out = attention_forward(hidden, enc_out, w_attn, b_attn, w_v)
    out = jax.block_until_ready(out)

    ref = attention_reference(hidden, enc_out, w_attn, b_attn, w_v)
    # bf16 matmul operands (f32 accumulation), optional bf16 tanh path and the
    # approx softmax reciprocal: compare at a bf16-appropriate tolerance.
    np.testing.assert_allclose(np.asarray(out), np.asarray(ref), rtol=2e-2, atol=5e-3)
    # softmax rows must still sum to ~1
    np.testing.assert_allclose(np.asarray(out).sum(axis=1), np.ones(B), atol=5e-3)

    print("KERNEL_OK")
</pallas_src>

<mosaic_0001>
module attributes {stable_mosaic.version = 11 : i64} {
  func.func @_attention_kernel(%arg0: i32, %arg1: memref<16x32xbf16, #tpu.memory_space<vmem>>, %arg2: memref<128x32xbf16, #tpu.memory_space<vmem>>, %arg3: memref<32x128xbf16, #tpu.memory_space<vmem>>, %arg4: memref<32x128xbf16, #tpu.memory_space<vmem>>, %arg5: memref<1x128xf32, #tpu.memory_space<vmem>>, %arg6: memref<1x128xf32, #tpu.memory_space<vmem>>, %arg7: memref<16x8xf32, #tpu.memory_space<vmem>>) attributes {dimension_semantics = [#tpu.dimension_semantics<parallel>], iteration_bounds = array<i64: 1>, scalar_prefetch = 0 : i64, scratch_operands = 0 : i64, tpu.core_type = #tpu.core_type<tc>, window_params = [{transform_indices = @transform_0, window_bounds = array<i64: 16, 32>}, {transform_indices = @transform_1, window_bounds = array<i64: 128, 32>}, {pipeline_mode = #tpu.pipeline_mode<synchronous>, transform_indices = @transform_2, window_bounds = array<i64: 32, 128>}, {pipeline_mode = #tpu.pipeline_mode<synchronous>, transform_indices = @transform_3, window_bounds = array<i64: 32, 128>}, {pipeline_mode = #tpu.pipeline_mode<synchronous>, transform_indices = @transform_4, window_bounds = array<i64: 1, 128>}, {pipeline_mode = #tpu.pipeline_mode<synchronous>, transform_indices = @transform_5, window_bounds = array<i64: 1, 128>}, {transform_indices = @transform_6, window_bounds = array<i64: 16, 8>}]} {
    %c0 = arith.constant 0 : index
    %c0_0 = arith.constant 0 : index
    %0 = vector.load %arg1[%c0, %c0_0] : memref<16x32xbf16, #tpu.memory_space<vmem>>, vector<16x32xbf16>
    %c0_1 = arith.constant 0 : index
    %c0_2 = arith.constant 0 : index
    %1 = vector.load %arg2[%c0_1, %c0_2] : memref<128x32xbf16, #tpu.memory_space<vmem>>, vector<128x32xbf16>
    %c0_3 = arith.constant 0 : index
    %c0_4 = arith.constant 0 : index
    %2 = vector.load %arg3[%c0_3, %c0_4] : memref<32x128xbf16, #tpu.memory_space<vmem>>, vector<32x128xbf16>
    %cst = arith.constant dense<0.000000e+00> : vector<16x128xf32>
    %3 = tpu.matmul %0, %2, %cst {dimension_numbers = #tpu.dot_dimension_numbers<[1], [0], [0], [1], [0, 0, 1, 1], [], []>} : vector<16x32xbf16>, vector<32x128xbf16>, vector<16x128xf32> -> vector<16x128xf32>
    %c0_5 = arith.constant 0 : index
    %c0_6 = arith.constant 0 : index
    %4 = vector.load %arg4[%c0_5, %c0_6] : memref<32x128xbf16, #tpu.memory_space<vmem>>, vector<32x128xbf16>
    %cst_7 = arith.constant dense<0.000000e+00> : vector<128x128xf32>
    %5 = tpu.matmul %1, %4, %cst_7 {dimension_numbers = #tpu.dot_dimension_numbers<[1], [0], [0], [1], [0, 0, 1, 1], [], []>} : vector<128x32xbf16>, vector<32x128xbf16>, vector<128x128xf32> -> vector<128x128xf32>
    %c0_8 = arith.constant 0 : index
    %c0_9 = arith.constant 0 : index
    %6 = vector.load %arg5[%c0_8, %c0_9] : memref<1x128xf32, #tpu.memory_space<vmem>>, vector<1x128xf32>
    %7 = vector.broadcast %6 : vector<1x128xf32> to vector<16x128xf32>
    %8 = arith.addf %3, %7 : vector<16x128xf32>
    %9 = vector.shape_cast %5 : vector<128x128xf32> to vector<16x8x128xf32>
    %10 = vector.shape_cast %8 : vector<16x128xf32> to vector<16x1x128xf32>
    %11 = vector.broadcast %10 : vector<16x1x128xf32> to vector<16x8x128xf32>
    %12 = arith.addf %9, %11 : vector<16x8x128xf32>
    %13 = math.tanh %12 : vector<16x8x128xf32>
    %c0_10 = arith.constant 0 : index
    %c0_11 = arith.constant 0 : index
    %14 = vector.load %arg6[%c0_10, %c0_11] : memref<1x128xf32, #tpu.memory_space<vmem>>, vector<1x128xf32>
    %15 = vector.shape_cast %14 : vector<1x128xf32> to vector<1x1x128xf32>
    %16 = vector.broadcast %15 : vector<1x1x128xf32> to vector<16x8x128xf32>
    %17 = arith.mulf %13, %16 : vector<16x8x128xf32>
    %cst_12 = arith.constant dense<0.000000e+00> : vector<16x8xf32>
    %18 = vector.multi_reduction <add>, %17, %cst_12 [2] : vector<16x8x128xf32> to vector<16x8xf32>
    %cst_13 = arith.constant dense<0xFF800000> : vector<16xf32>
    %19 = vector.multi_reduction <maximumf>, %18, %cst_13 [1] : vector<16x8xf32> to vector<16xf32>
    %20 = vector.shape_cast %19 : vector<16xf32> to vector<16x1xf32>
    %21 = vector.broadcast %20 : vector<16x1xf32> to vector<16x8xf32>
    %22 = arith.subf %18, %21 : vector<16x8xf32>
    %23 = math.exp %22 : vector<16x8xf32>
    %cst_14 = arith.constant dense<0.000000e+00> : vector<16xf32>
    %24 = vector.multi_reduction <add>, %23, %cst_14 [1] : vector<16x8xf32> to vector<16xf32>
    %25 = vector.shape_cast %24 : vector<16xf32> to vector<16x1xf32>
    %26 = tpu.reciprocal %25 {approx = true} : vector<16x1xf32> -> vector<16x1xf32>
    %27 = vector.broadcast %26 : vector<16x1xf32> to vector<16x8xf32>
    %28 = arith.mulf %23, %27 : vector<16x8xf32>
    %c0_15 = arith.constant 0 : index
    %c0_16 = arith.constant 0 : index
    %29 = vector.load %arg7[%c0_15, %c0_16] : memref<16x8xf32, #tpu.memory_space<vmem>>, vector<16x8xf32>
    tpu.vector_store %arg7[%c0_15, %c0_16], %28 {strides = array<i32>} : memref<16x8xf32, #tpu.memory_space<vmem>>, vector<16x8xf32>,
    return
  }
  func.func @transform_0(%arg0: i32) -> (i32, i32) {
    %c0_i32 = arith.constant 0 : i32
    %c0_i32_0 = arith.constant 0 : i32
    return %arg0, %c0_i32 : i32, i32
  }
  func.func @transform_1(%arg0: i32) -> (i32, i32) {
    %c0_i32 = arith.constant 0 : i32
    %c0_i32_0 = arith.constant 0 : i32
    return %arg0, %c0_i32 : i32, i32
  }
  func.func @transform_2(%arg0: i32) -> (i32, i32) {
    %c0_i32 = arith.constant 0 : i32
    %c0_i32_0 = arith.constant 0 : i32
    %c0_i32_1 = arith.constant 0 : i32
    return %c0_i32, %c0_i32_0 : i32, i32
  }
  func.func @transform_3(%arg0: i32) -> (i32, i32) {
    %c0_i32 = arith.constant 0 : i32
    %c0_i32_0 = arith.constant 0 : i32
    %c0_i32_1 = arith.constant 0 : i32
    return %c0_i32, %c0_i32_0 : i32, i32
  }
  func.func @transform_4(%arg0: i32) -> (i32, i32) {
    %c0_i32 = arith.constant 0 : i32
    %c0_i32_0 = arith.constant 0 : i32
    %c0_i32_1 = arith.constant 0 : i32
    return %c0_i32, %c0_i32_0 : i32, i32
  }
  func.func @transform_5(%arg0: i32) -> (i32, i32) {
    %c0_i32 = arith.constant 0 : i32
    %c0_i32_0 = arith.constant 0 : i32
    %c0_i32_1 = arith.constant 0 : i32
    return %c0_i32, %c0_i32_0 : i32, i32
  }
  func.func @transform_6(%arg0: i32) -> (i32, i32) {
    %c0_i32 = arith.constant 0 : i32
    %c0_i32_0 = arith.constant 0 : i32
    return %arg0, %c0_i32 : i32, i32
  }
}

</mosaic_0001>

<llo_original>
// kernel: tpu_custom_call.1
$region0: #{tpu_custom_call.1}
  #allocation0 [shape = 'u32[]', space=smem, size = 0x4, offset = 0x4, fixed_abs, tag = 'smem constant byte address 0x4 - core index']
  #allocation1 [shape = 'u32[144,128]{1,0:T(1,128)}', space=vmem, size = 0x12000, scoped, tag = 'internal scratch']
  %s0 = inlined_call_operand.vmem [shape: bf16[16,32], index: 0, kind: input, shape index: {}]
  %s1 = inlined_call_operand.vmem [shape: bf16[128,32], index: 1, kind: input, shape index: {}]
  %s2 = inlined_call_operand.vmem [shape: bf16[32,128], index: 2, kind: input, shape index: {}]
  %s3 = inlined_call_operand.vmem [shape: bf16[32,128], index: 3, kind: input, shape index: {}]
  %s4 = inlined_call_operand.vmem [shape: f32[1,128], index: 4, kind: input, shape index: {}]
  %s5 = inlined_call_operand.vmem [shape: f32[1,128], index: 5, kind: input, shape index: {}]
  %s6 = inlined_call_operand.vmem [shape: f32[16,8], index: 6, kind: output, shape index: {}]
  %s7 = sld [smem:[#allocation0]]
  $region34: #{tpu_custom_call.1} parent=0
    _
  %s9 = ssub.s32 1, %s7
  %s10 = scalar_select 0, %s9, %s7
  // Predicated region
  $region2: #{tpu_custom_call.1} parent=0 // pred_check
    _
  $region3: #{tpu_custom_call.1} parent=0 // pred_check_branch
    %12 = sbr.rel (0) target = $region5
  $region4: #{tpu_custom_call.1} parent=0 // pred_region
    _
  $region5: #{tpu_custom_call.1} parent=0 // pred_fallthru
    _
  // Predicated region
  $region6: #{tpu_custom_call.1} parent=0 // pred_check
    _
  $region7: #{tpu_custom_call.1} parent=0 // pred_check_branch
    %14 = sbr.rel (0) target = $region9
  $region8: #{tpu_custom_call.1} parent=0 // pred_region
    _
  $region9: #{tpu_custom_call.1} parent=0 // pred_fallthru
    _
  // Predicated region
  $region10: #{tpu_custom_call.1} parent=0 // pred_check
    _
  $region11: #{tpu_custom_call.1} parent=0 // pred_check_branch
    %16 = sbr.rel (0) target = $region13
  $region12: #{tpu_custom_call.1} parent=0 // pred_region
    _
  $region13: #{tpu_custom_call.1} parent=0 // pred_fallthru
    _
  // Predicated region
  $region14: #{tpu_custom_call.1} parent=0 // pred_check
    _
  $region15: #{tpu_custom_call.1} parent=0 // pred_check_branch
    %18 = sbr.rel (0) target = $region17
  $region16: #{tpu_custom_call.1} parent=0 // pred_region
    _
  $region17: #{tpu_custom_call.1} parent=0 // pred_fallthru
    _
  // Predicated region
  $region18: #{tpu_custom_call.1} parent=0 // pred_check
    _
  $region19: #{tpu_custom_call.1} parent=0 // pred_check_branch
    %20 = sbr.rel (0) target = $region21
  $region20: #{tpu_custom_call.1} parent=0 // pred_region
    _
  $region21: #{tpu_custom_call.1} parent=0 // pred_fallthru
    _
  // Predicated region
  $region22: #{tpu_custom_call.1} parent=0 // pred_check
    _
  $region23: #{tpu_custom_call.1} parent=0 // pred_check_branch
    %22 = sbr.rel (0) target = $region25
  $region24: #{tpu_custom_call.1} parent=0 // pred_region
    _
  $region25: #{tpu_custom_call.1} parent=0 // pred_fallthru
    _
  %v24 = vld [vmem:[%s0] sm:$0xf]
  %v25 = vld [vmem:[%s0 + $0x4] sm:$0xf]
  %v26 = vld [vmem:[%s1] sm:$0xf]
  %v27 = vld [vmem:[%s1 + $0x4] sm:$0xf]
  %v28 = vld [vmem:[%s1 + $0x8] sm:$0xf]
  %v29 = vld [vmem:[%s1 + $0xc] sm:$0xf]
  %v30 = vld [vmem:[%s1 + $0x10] sm:$0xf]
  %v31 = vld [vmem:[%s1 + $0x14] sm:$0xf]
  %v32 = vld [vmem:[%s1 + $0x18] sm:$0xf]
  %v33 = vld [vmem:[%s1 + $0x1c] sm:$0xf]
  %v34 = vld [vmem:[%s1 + $0x20] sm:$0xf]
  %v35 = vld [vmem:[%s1 + $0x24] sm:$0xf]
  %v36 = vld [vmem:[%s1 + $0x28] sm:$0xf]
  %v37 = vld [vmem:[%s1 + $0x2c] sm:$0xf]
  %v38 = vld [vmem:[%s1 + $0x30] sm:$0xf]
  %v39 = vld [vmem:[%s1 + $0x34] sm:$0xf]
  %v40 = vld [vmem:[%s1 + $0x38] sm:$0xf]
  %v41 = vld [vmem:[%s1 + $0x3c] sm:$0xf]
  %v42 = vld [vmem:[%s2] sm:$0xf]
  %v43 = vld [vmem:[%s2 + $0x4] sm:$0xf]
  %v44 = vld [vmem:[%s2 + $0x8] sm:$0xf]
  %v45 = vld [vmem:[%s2 + $0xc] sm:$0xf]
  %v46 = vld [vmem:[%s3] sm:$0xf]
  %v47 = vld [vmem:[%s3 + $0x4] sm:$0xf]
  %v48 = vld [vmem:[%s3 + $0x8] sm:$0xf]
  %v49 = vld [vmem:[%s3 + $0xc] sm:$0xf]
  %v66 = vunpack.c.l.b16 %v26
  %v67 = vunpack.c.l.b16 %v27
  %v68 = vunpack.c.l.b16 %v28
  %v69 = vunpack.c.l.b16 %v29
  %v70 = vunpack.c.l.b16 %v30
  %v71 = vunpack.c.l.b16 %v31
  %v72 = vunpack.c.l.b16 %v32
  %v73 = vunpack.c.l.b16 %v33
  %v74 = vunpack.c.l.b16 %v34
  %v75 = vunpack.c.l.b16 %v35
  %v76 = vunpack.c.l.b16 %v36
  %v77 = vunpack.c.l.b16 %v37
  %v78 = vunpack.c.l.b16 %v38
  %v79 = vunpack.c.l.b16 %v39
  %v80 = vunpack.c.l.b16 %v40
  %v81 = vunpack.c.l.b16 %v41
  %v82 = vpack.c.b16 %v67, %v66
  %v83 = vpack.c.b16 %v69, %v68
  %v84 = vpack.c.b16 %v71, %v70
  %v85 = vpack.c.b16 %v73, %v72
  %v86 = vpack.c.b16 %v75, %v74
  %v87 = vpack.c.b16 %v77, %v76
  %v88 = vpack.c.b16 %v79, %v78
  %v89 = vpack.c.b16 %v81, %v80
  %v94 = vunpack.c.l.b16 %v46
  %v95 = vunpack.c.l.b16 %v47
  %v96 = vunpack.c.l.b16 %v48
  %v97 = vunpack.c.l.b16 %v49
  %v98 = vpack.c.b16 %v95, %v94
  %v99 = vpack.c.b16 %v97, %v96
  %vm102 = vcmask 261120
  %v104 = vsel %vm102, %v82, 0
  %v107 = vsel %vm102, %v83, 0
  %v110 = vsel %vm102, %v84, 0
  %v113 = vsel %vm102, %v85, 0
  %v116 = vsel %vm102, %v86, 0
  %v119 = vsel %vm102, %v87, 0
  %v122 = vsel %vm102, %v88, 0
  %v125 = vsel %vm102, %v89, 0
  %127 = vmatprep.subr.bf16.mxu0 0
  %128 = vmatpush1.bf16.msra.mxu0 0
  %129 = vmatprep.subr.bf16.mxu0 0
  %130 = vmatpush1.bf16.msra.mxu0 0
  %131 = vmatprep.subr.bf16.mxu0 0
  %132 = vmatpush1.bf16.msra.mxu0 0
  %133 = vmatprep.subr.bf16.mxu0 0
  %134 = vmatpush1.bf16.msra.mxu0 0
  %135 = vmatprep.subr.bf16.mxu0 0
  %136 = vmatpush1.bf16.msra.mxu0 0
  %137 = vmatprep.subr.bf16.mxu0 0
  %138 = vmatpush1.bf16.msra.mxu0 0
  %139 = vmatprep.subr.bf16.mxu0 0
  %140 = vmatpush1.bf16.msra.mxu0 %v99
  %141 = vmatprep.subr.bf16.mxu0 0
  %142 = vmatpush1.bf16.msra.mxu0 %v98
  %143 = vmatprep.subr.bf16.mxu0 0
  %144 = vmatpush2.bf16.msra.mxu0 0
  %145 = vmatprep.subr.bf16.mxu0 0
  %146 = vmatpush2.bf16.msra.mxu0 0
  %147 = vmatprep.subr.bf16.mxu0 0
  %148 = vmatpush2.bf16.msra.mxu0 0
  %149 = vmatprep.subr.bf16.mxu0 0
  %150 = vmatpush2.bf16.msra.mxu0 0
  %151 = vmatprep.subr.bf16.mxu0 0
  %152 = vmatpush2.bf16.msra.mxu0 0
  %153 = vmatprep.subr.bf16.mxu0 0
  %154 = vmatpush2.bf16.msra.mxu0 0
  %155 = vmatprep.subr.bf16.mxu0 0
  %156 = vmatpush2.bf16.msra.mxu0 0
  %157 = vmatprep.subr.bf16.mxu0 0
  %158 = vmatpush2.bf16.msra.mxu0 0
  %159 = vmatprep.mubr.bf16.mxu0 0
  %160 = vmatmul.mubr.bf16.gmra.mxu0 %v104
  %v161 = vpop.f32.mrf.mxu0
  %v162 = vadd.f32 0.0, %v161
  %v163 = vpop.f32.mrf.mxu0
  %v164 = vpop.f32.mrf.mxu0
  %v165 = vadd.f32 0.0, %v164
  %v166 = vpop.f32.mrf.mxu0
  %167 = vmatprep.mubr.bf16.mxu0 0
  %168 = vmatmul.mubr.bf16.gmra.mxu0 %v107
  %v169 = vpop.f32.mrf.mxu0
  %v170 = vadd.f32 0.0, %v169
  %v171 = vpop.f32.mrf.mxu0
  %v172 = vpop.f32.mrf.mxu0
  %v173 = vadd.f32 0.0, %v172
  %v174 = vpop.f32.mrf.mxu0
  %175 = vmatprep.mubr.bf16.mxu0 0
  %176 = vmatmul.mubr.bf16.gmra.mxu0 %v110
  %v177 = vpop.f32.mrf.mxu0
  %v178 = vadd.f32 0.0, %v177
  %v179 = vpop.f32.mrf.mxu0
  %v180 = vpop.f32.mrf.mxu0
  %v181 = vadd.f32 0.0, %v180
  %v182 = vpop.f32.mrf.mxu0
  %183 = vmatprep.mubr.bf16.mxu0 0
  %184 = vmatmul.mubr.bf16.gmra.mxu0 %v113
  %v185 = vpop.f32.mrf.mxu0
  %v186 = vadd.f32 0.0, %v185
  %v187 = vpop.f32.mrf.mxu0
  %v188 = vpop.f32.mrf.mxu0
  %v189 = vadd.f32 0.0, %v188
  %v190 = vpop.f32.mrf.mxu0
  %191 = vmatprep.mubr.bf16.mxu0 0
  %192 = vmatmul.mubr.bf16.gmra.mxu0 %v116
  %v193 = vpop.f32.mrf.mxu0
  %v194 = vadd.f32 0.0, %v193
  %v195 = vpop.f32.mrf.mxu0
  %v196 = vpop.f32.mrf.mxu0
  %v197 = vadd.f32 0.0, %v196
  %v198 = vpop.f32.mrf.mxu0
  %199 = vmatprep.mubr.bf16.mxu0 0
  %200 = vmatmul.mubr.bf16.gmra.mxu0 %v119
  %v201 = vpop.f32.mrf.mxu0
  %v202 = vadd.f32 0.0, %v201
  %v203 = vpop.f32.mrf.mxu0
  %v204 = vpop.f32.mrf.mxu0
  %v205 = vadd.f32 0.0, %v204
  %v206 = vpop.f32.mrf.mxu0
  %207 = vmatprep.mubr.bf16.mxu0 0
  %208 = vmatmul.mubr.bf16.gmra.mxu0 %v122
  %v209 = vpop.f32.mrf.mxu0
  %v210 = vadd.f32 0.0, %v209
  %v211 = vpop.f32.mrf.mxu0
  %v212 = vpop.f32.mrf.mxu0
  %v213 = vadd.f32 0.0, %v212
  %v214 = vpop.f32.mrf.mxu0
  %215 = vmatprep.mubr.bf16.mxu0 0
  %216 = vmatmul.mubr.bf16.gmra.mxu0 %v125
  %v217 = vpop.f32.mrf.mxu0
  %v218 = vadd.f32 0.0, %v217
  %v219 = vpop.f32.mrf.mxu0
  %v220 = vpop.f32.mrf.mxu0
  %v221 = vadd.f32 0.0, %v220
  %v222 = vpop.f32.mrf.mxu0
  %223 = vdwg.mxu0
  %v224 = vld [vmem:[%s4] sm:$0x1]
  %v226 = vlaneseq
  %v227 = vshrl.u32 %v226, 7
  %v228 = vsub.s32 0, %v227
  %v229 = vrot.slane %v224, %v228
  %v233 = vunpack.c.l.b16 %v24
  %v234 = vunpack.c.l.b16 %v25
  %v235 = vpack.c.b16 %v234, %v233
  %v240 = vunpack.c.l.b16 %v42
  %v241 = vunpack.c.l.b16 %v43
  %v242 = vunpack.c.l.b16 %v44
  %v243 = vunpack.c.l.b16 %v45
  %v244 = vpack.c.b16 %v241, %v240
  %v245 = vpack.c.b16 %v243, %v242
  %v249 = vsel %vm102, %v235, 0
  %251 = vmatprep.subr.bf16.mxu0 0
  %252 = vmatpush1.bf16.msra.mxu0 0
  %253 = vmatprep.subr.bf16.mxu0 0
  %254 = vmatpush1.bf16.msra.mxu0 0
  %255 = vmatprep.subr.bf16.mxu0 0
  %256 = vmatpush1.bf16.msra.mxu0 0
  %257 = vmatprep.subr.bf16.mxu0 0
  %258 = vmatpush1.bf16.msra.mxu0 0
  %259 = vmatprep.subr.bf16.mxu0 0
  %260 = vmatpush1.bf16.msra.mxu0 0
  %261 = vmatprep.subr.bf16.mxu0 0
  %262 = vmatpush1.bf16.msra.mxu0 0
  %263 = vmatprep.subr.bf16.mxu0 0
  %264 = vmatpush1.bf16.msra.mxu0 %v245
  %265 = vmatprep.subr.bf16.mxu0 0
  %266 = vmatpush1.bf16.msra.mxu0 %v244
  %267 = vmatprep.subr.bf16.mxu0 0
  %268 = vmatpush2.bf16.msra.mxu0 0
  %269 = vmatprep.subr.bf16.mxu0 0
  %270 = vmatpush2.bf16.msra.mxu0 0
  %271 = vmatprep.subr.bf16.mxu0 0
  %272 = vmatpush2.bf16.msra.mxu0 0
  %273 = vmatprep.subr.bf16.mxu0 0
  %274 = vmatpush2.bf16.msra.mxu0 0
  %275 = vmatprep.subr.bf16.mxu0 0
  %276 = vmatpush2.bf16.msra.mxu0 0
  %277 = vmatprep.subr.bf16.mxu0 0
  %278 = vmatpush2.bf16.msra.mxu0 0
  %279 = vmatprep.subr.bf16.mxu0 0
  %280 = vmatpush2.bf16.msra.mxu0 0
  %281 = vmatprep.subr.bf16.mxu0 0
  %282 = vmatpush2.bf16.msra.mxu0 0
  %283 = vmatprep.mubr.bf16.mxu0 0
  %284 = vmatmul.mubr.bf16.gmra.mxu0 %v249
  %v285 = vpop.f32.mrf.mxu0
  %v286 = vadd.f32 %v229, %v285
  %v287 = vpop.f32.mrf.mxu0
  %v288 = vpop.f32.mrf.mxu0
  %v289 = vadd.f32 %v229, %v288
  %v290 = vpop.f32.mrf.mxu0
  %291 = vdwg.mxu0
  %v294 = vcombine.high %v286, %v286
  %v296 = vunpack.c.l.s4 1966171168
  %v297 = vunpack.c.0.s8 %v296
  %v298 = vlaneseq
  %v299 = vshrl.u32 %v298, 7
  %v300 = vsub.s32 %v297, %v299
  %v301 = vrot.slane %v286, %v300
  %v303 = vunpack.c.l.s4 1966171168
  %v304 = vunpack.c.0.s8 %v303
  %v305 = vlaneseq
  %v306 = vshrl.u32 %v305, 7
  %v307 = vsub.s32 %v304, %v306
  %v308 = vrot.slane %v294, %v307
  %v309 = vcombine.high %v301, %v301
  %v310 = vcombine.high %v308, %v308
  %v312 = vunpack.c.l.s4 1966171168
  %v313 = vunpack.c.0.s8 %v312
  %v314 = vlaneseq
  %v315 = vshrl.u32 %v314, 7
  %v316 = vsub.s32 %v313, %v315
  %v317 = vrot.slane %v301, %v316
  %v319 = vunpack.c.l.s4 1966171168
  %v320 = vunpack.c.0.s8 %v319
  %v321 = vlaneseq
  %v322 = vshrl.u32 %v321, 7
  %v323 = vsub.s32 %v320, %v322
  %v324 = vrot.slane %v308, %v323
  %v326 = vunpack.c.l.s4 1966171168
  %v327 = vunpack.c.0.s8 %v326
  %v328 = vlaneseq
  %v329 = vshrl.u32 %v328, 7
  %v330 = vsub.s32 %v327, %v329
  %v331 = vrot.slane %v309, %v330
  %v333 = vunpack.c.l.s4 1966171168
  %v334 = vunpack.c.0.s8 %v333
  %v335 = vlaneseq
  %v336 = vshrl.u32 %v335, 7
  %v337 = vsub.s32 %v334, %v336
  %v338 = vrot.slane %v310, %v337
  %v339 = vcombine.high %v317, %v317
  %v340 = vcombine.high %v324, %v324
  %v341 = vcombine.high %v331, %v331
  %v342 = vcombine.high %v338, %v338
  %v343 = vcombine.high %v289, %v289
  %v345 = vunpack.c.l.s4 1966171168
  %v346 = vunpack.c.0.s8 %v345
  %v347 = vlaneseq
  %v348 = vshrl.u32 %v347, 7
  %v349 = vsub.s32 %v346, %v348
  %v350 = vrot.slane %v289, %v349
  %v352 = vunpack.c.l.s4 1966171168
  %v353 = vunpack.c.0.s8 %v352
  %v354 = vlaneseq
  %v355 = vshrl.u32 %v354, 7
  %v356 = vsub.s32 %v353, %v355
  %v357 = vrot.slane %v343, %v356
  %v358 = vcombine.high %v350, %v350
  %v359 = vcombine.high %v357, %v357
  %v361 = vunpack.c.l.s4 1966171168
  %v362 = vunpack.c.0.s8 %v361
  %v363 = vlaneseq
  %v364 = vshrl.u32 %v363, 7
  %v365 = vsub.s32 %v362, %v364
  %v366 = vrot.slane %v350, %v365
  %v368 = vunpack.c.l.s4 1966171168
  %v369 = vunpack.c.0.s8 %v368
  %v370 = vlaneseq
  %v371 = vshrl.u32 %v370, 7
  %v372 = vsub.s32 %v369, %v371
  %v373 = vrot.slane %v357, %v372
  %v375 = vunpack.c.l.s4 1966171168
  %v376 = vunpack.c.0.s8 %v375
  %v377 = vlaneseq
  %v378 = vshrl.u32 %v377, 7
  %v379 = vsub.s32 %v376, %v378
  %v380 = vrot.slane %v358, %v379
  %v382 = vunpack.c.l.s4 1966171168
  %v383 = vunpack.c.0.s8 %v382
  %v384 = vlaneseq
  %v385 = vshrl.u32 %v384, 7
  %v386 = vsub.s32 %v383, %v385
  %v387 = vrot.slane %v359, %v386
  %v388 = vcombine.high %v366, %v366
  %v389 = vcombine.high %v373, %v373
  %v390 = vcombine.high %v380, %v380
  %v391 = vcombine.high %v387, %v387
  %v392 = vlaneseq
  %v393 = vshrl.u32 %v392, 7
  %v394 = vsub.s32 0, %v393
  %v395 = vrot.slane %v317, %v394
  %v396 = vlaneseq
  %v397 = vshrl.u32 %v396, 7
  %v398 = vsub.s32 0, %v397
  %v399 = vrot.slane %v331, %v398
  %v400 = vlaneseq
  %v401 = vshrl.u32 %v400, 7
  %v402 = vsub.s32 0, %v401
  %v403 = vrot.slane %v339, %v402
  %v404 = vlaneseq
  %v405 = vshrl.u32 %v404, 7
  %v406 = vsub.s32 0, %v405
  %v407 = vrot.slane %v341, %v406
  %v408 = vlaneseq
  %v409 = vshrl.u32 %v408, 7
  %v410 = vsub.s32 0, %v409
  %v411 = vrot.slane %v324, %v410
  %v412 = vlaneseq
  %v413 = vshrl.u32 %v412, 7
  %v414 = vsub.s32 0, %v413
  %v415 = vrot.slane %v338, %v414
  %v416 = vlaneseq
  %v417 = vshrl.u32 %v416, 7
  %v418 = vsub.s32 0, %v417
  %v419 = vrot.slane %v340, %v418
  %v420 = vlaneseq
  %v421 = vshrl.u32 %v420, 7
  %v422 = vsub.s32 0, %v421
  %v423 = vrot.slane %v342, %v422
  %v424 = vlaneseq
  %v425 = vshrl.u32 %v424, 7
  %v426 = vsub.s32 0, %v425
  %v427 = vrot.slane %v366, %v426
  %v428 = vlaneseq
  %v429 = vshrl.u32 %v428, 7
  %v430 = vsub.s32 0, %v429
  %v431 = vrot.slane %v380, %v430
  %v432 = vlaneseq
  %v433 = vshrl.u32 %v432, 7
  %v434 = vsub.s32 0, %v433
  %v435 = vrot.slane %v388, %v434
  %v436 = vlaneseq
  %v437 = vshrl.u32 %v436, 7
  %v438 = vsub.s32 0, %v437
  %v439 = vrot.slane %v390, %v438
  %v440 = vlaneseq
  %v441 = vshrl.u32 %v440, 7
  %v442 = vsub.s32 0, %v441
  %v443 = vrot.slane %v373, %v442
  %v444 = vlaneseq
  %v445 = vshrl.u32 %v444, 7
  %v446 = vsub.s32 0, %v445
  %v447 = vrot.slane %v387, %v446
  %v448 = vlaneseq
  %v449 = vshrl.u32 %v448, 7
  %v450 = vsub.s32 0, %v449
  %v451 = vrot.slane %v389, %v450
  %v452 = vlaneseq
  %v453 = vshrl.u32 %v452, 7
  %v454 = vsub.s32 0, %v453
  %v455 = vrot.slane %v391, %v454
  %v472 = vadd.f32 %v162, %v395
  %v473 = vadd.f32 %v165, %v399
  %v474 = vadd.f32 %v170, %v403
  %v475 = vadd.f32 %v173, %v407
  %v476 = vadd.f32 %v178, %v411
  %v477 = vadd.f32 %v181, %v415
  %v478 = vadd.f32 %v186, %v419
  %v479 = vadd.f32 %v189, %v423
  %v480 = vadd.f32 %v194, %v427
  %v481 = vadd.f32 %v197, %v431
  %v482 = vadd.f32 %v202, %v435
  %v483 = vadd.f32 %v205, %v439
  %v484 = vadd.f32 %v210, %v443
  %v485 = vadd.f32 %v213, %v447
  %v486 = vadd.f32 %v218, %v451
  %v487 = vadd.f32 %v221, %v455
  %v488 = vtanh.pop %v472
  %v489 = vtanh.pop %v473
  %v490 = vtanh.pop %v474
  %v491 = vtanh.pop %v475
  %v492 = vtanh.pop %v476
  %v493 = vtanh.pop %v477
  %v494 = vtanh.pop %v478
  %v495 = vtanh.pop %v479
  %v496 = vtanh.pop %v480
  %v497 = vtanh.pop %v481
  %v498 = vtanh.pop %v482
  %v499 = vtanh.pop %v483
  %v500 = vtanh.pop %v484
  %v501 = vtanh.pop %v485
  %v502 = vtanh.pop %v486
  %v503 = vtanh.pop %v487
  %v504 = vld [vmem:[%s5] sm:$0x1]
  %v506 = vlaneseq
  %v507 = vshrl.u32 %v506, 7
  %v508 = vsub.s32 0, %v507
  %v509 = vrot.slane %v504, %v508
  %v511 = vmul.f32 %v488, %v509
  %v512 = vmul.f32 %v489, %v509
  %v513 = vmul.f32 %v490, %v509
  %v514 = vmul.f32 %v491, %v509
  %v515 = vmul.f32 %v492, %v509
  %v516 = vmul.f32 %v493, %v509
  %v517 = vmul.f32 %v494, %v509
  %v518 = vmul.f32 %v495, %v509
  %v519 = vmul.f32 %v496, %v509
  %v520 = vmul.f32 %v497, %v509
  %v521 = vmul.f32 %v498, %v509
  %v522 = vmul.f32 %v499, %v509
  %v523 = vmul.f32 %v500, %v509
  %v524 = vmul.f32 %v501, %v509
  %v525 = vmul.f32 %v502, %v509
  %v526 = vmul.f32 %v503, %v509
  %527 = vadd.xlane.f32.xlu0 %v511
  %v528 = vpop.xlane.xlu0 %527
  %529 = vadd.xlane.f32.xlu0 %v512
  %v530 = vpop.xlane.xlu0 %529
  %531 = vadd.xlane.f32.xlu0 %v513
  %v532 = vpop.xlane.xlu0 %531
  %533 = vadd.xlane.f32.xlu0 %v514
  %v534 = vpop.xlane.xlu0 %533
  %535 = vadd.xlane.f32.xlu0 %v515
  %v536 = vpop.xlane.xlu0 %535
  %537 = vadd.xlane.f32.xlu0 %v516
  %v538 = vpop.xlane.xlu0 %537
  %539 = vadd.xlane.f32.xlu0 %v517
  %v540 = vpop.xlane.xlu0 %539
  %541 = vadd.xlane.f32.xlu0 %v518
  %v542 = vpop.xlane.xlu0 %541
  %543 = vadd.xlane.f32.xlu0 %v519
  %v544 = vpop.xlane.xlu0 %543
  %545 = vadd.xlane.f32.xlu0 %v520
  %v546 = vpop.xlane.xlu0 %545
  %547 = vadd.xlane.f32.xlu0 %v521
  %v548 = vpop.xlane.xlu0 %547
  %549 = vadd.xlane.f32.xlu0 %v522
  %v550 = vpop.xlane.xlu0 %549
  %551 = vadd.xlane.f32.xlu0 %v523
  %v552 = vpop.xlane.xlu0 %551
  %553 = vadd.xlane.f32.xlu0 %v524
  %v554 = vpop.xlane.xlu0 %553
  %555 = vadd.xlane.f32.xlu0 %v525
  %v556 = vpop.xlane.xlu0 %555
  %557 = vadd.xlane.f32.xlu0 %v526
  %v558 = vpop.xlane.xlu0 %557
  %v575 = vlaneseq
  %v576 = vand.u32 %v575, 127
  %v577 = vlaneseq
  %v578 = vshrl.u32 %v577, 7
  %v579 = vsub.s32 %v576, %v578
  %v580 = vrot.slane %v528, %v579
  %v581 = vlaneseq
  %v582 = vshrl.u32 %v581, 7
  %v583 = vsub.s32 %v576, %v582
  %v584 = vrot.slane %v530, %v583
  %v585 = vlaneseq
  %v586 = vshrl.u32 %v585, 7
  %v587 = vsub.s32 %v576, %v586
  %v588 = vrot.slane %v532, %v587
  %v589 = vlaneseq
  %v590 = vshrl.u32 %v589, 7
  %v591 = vsub.s32 %v576, %v590
  %v592 = vrot.slane %v534, %v591
  %v593 = vlaneseq
  %v594 = vshrl.u32 %v593, 7
  %v595 = vsub.s32 %v576, %v594
  %v596 = vrot.slane %v536, %v595
  %v597 = vlaneseq
  %v598 = vshrl.u32 %v597, 7
  %v599 = vsub.s32 %v576, %v598
  %v600 = vrot.slane %v538, %v599
  %v601 = vlaneseq
  %v602 = vshrl.u32 %v601, 7
  %v603 = vsub.s32 %v576, %v602
  %v604 = vrot.slane %v540, %v603
  %v605 = vlaneseq
  %v606 = vshrl.u32 %v605, 7
  %v607 = vsub.s32 %v576, %v606
  %v608 = vrot.slane %v542, %v607
  %v609 = vlaneseq
  %v610 = vshrl.u32 %v609, 7
  %v611 = vsub.s32 %v576, %v610
  %v612 = vrot.slane %v544, %v611
  %v613 = vlaneseq
  %v614 = vshrl.u32 %v613, 7
  %v615 = vsub.s32 %v576, %v614
  %v616 = vrot.slane %v546, %v615
  %v617 = vlaneseq
  %v618 = vshrl.u32 %v617, 7
  %v619 = vsub.s32 %v576, %v618
  %v620 = vrot.slane %v548, %v619
  %v621 = vlaneseq
  %v622 = vshrl.u32 %v621, 7
  %v623 = vsub.s32 %v576, %v622
  %v624 = vrot.slane %v550, %v623
  %v625 = vlaneseq
  %v626 = vshrl.u32 %v625, 7
  %v627 = vsub.s32 %v576, %v626
  %v628 = vrot.slane %v552, %v627
  %v629 = vlaneseq
  %v630 = vshrl.u32 %v629, 7
  %v631 = vsub.s32 %v576, %v630
  %v632 = vrot.slane %v554, %v631
  %v633 = vlaneseq
  %v634 = vshrl.u32 %v633, 7
  %v635 = vsub.s32 %v576, %v634
  %v636 = vrot.slane %v556, %v635
  %v637 = vlaneseq
  %v638 = vshrl.u32 %v637, 7
  %v639 = vsub.s32 %v576, %v638
  %v640 = vrot.slane %v558, %v639
  %vm641 = vcmask 1041409
  %v642 = vsel %vm641, %v584, %v580
  %vm643 = vcmask 1042434
  %v644 = vsel %vm643, %v588, %v642
  %vm645 = vcmask 1043459
  %v646 = vsel %vm645, %v592, %v644
  %vm647 = vcmask 1044484
  %v648 = vsel %vm647, %v596, %v646
  %vm649 = vcmask 1045509
  %v650 = vsel %vm649, %v600, %v648
  %vm651 = vcmask 1046534
  %v652 = vsel %vm651, %v604, %v650
  %vm653 = vcmask 1047559
  %v654 = vsel %vm653, %v608, %v652
  %v655 = vsel %vm641, %v616, %v612
  %v656 = vsel %vm643, %v620, %v655
  %v657 = vsel %vm645, %v624, %v656
  %v658 = vsel %vm647, %v628, %v657
  %v659 = vsel %vm649, %v632, %v658
  %v660 = vsel %vm651, %v636, %v659
  %v661 = vsel %vm653, %v640, %v660
  %vm664 = vcmask 64512
  %v665 = vsel %vm664, %v654, -inf
  %666 = vmax.xlane.f32.xlu0 %v665
  %v667 = vpop.xlane.xlu0 %666
  %v668 = vsel %vm664, %v661, -inf
  %669 = vmax.xlane.f32.xlu0 %v668
  %v670 = vpop.xlane.xlu0 %669
  %v673 = vlaneseq
  %v674 = vshrl.u32 %v673, 7
  %v675 = vsub.s32 0, %v674
  %v676 = vrot.slane %v667, %v675
  %v677 = vlaneseq
  %v678 = vshrl.u32 %v677, 7
  %v679 = vsub.s32 1, %v678
  %v680 = vrot.slane %v667, %v679
  %v681 = vlaneseq
  %v682 = vshrl.u32 %v681, 7
  %v683 = vsub.s32 2, %v682
  %v684 = vrot.slane %v667, %v683
  %v685 = vlaneseq
  %v686 = vshrl.u32 %v685, 7
  %v687 = vsub.s32 3, %v686
  %v688 = vrot.slane %v667, %v687
  %v689 = vlaneseq
  %v690 = vshrl.u32 %v689, 7
  %v691 = vsub.s32 4, %v690
  %v692 = vrot.slane %v667, %v691
  %v693 = vlaneseq
  %v694 = vshrl.u32 %v693, 7
  %v695 = vsub.s32 5, %v694
  %v696 = vrot.slane %v667, %v695
  %v697 = vlaneseq
  %v698 = vshrl.u32 %v697, 7
  %v699 = vsub.s32 6, %v698
  %v700 = vrot.slane %v667, %v699
  %v701 = vlaneseq
  %v702 = vshrl.u32 %v701, 7
  %v703 = vsub.s32 7, %v702
  %v704 = vrot.slane %v667, %v703
  %v705 = vlaneseq
  %v706 = vshrl.u32 %v705, 7
  %v707 = vsub.s32 0, %v706
  %v708 = vrot.slane %v670, %v707
  %v709 = vlaneseq
  %v710 = vshrl.u32 %v709, 7
  %v711 = vsub.s32 1, %v710
  %v712 = vrot.slane %v670, %v711
  %v713 = vlaneseq
  %v714 = vshrl.u32 %v713, 7
  %v715 = vsub.s32 2, %v714
  %v716 = vrot.slane %v670, %v715
  %v717 = vlaneseq
  %v718 = vshrl.u32 %v717, 7
  %v719 = vsub.s32 3, %v718
  %v720 = vrot.slane %v670, %v719
  %v721 = vlaneseq
  %v722 = vshrl.u32 %v721, 7
  %v723 = vsub.s32 4, %v722
  %v724 = vrot.slane %v670, %v723
  %v725 = vlaneseq
  %v726 = vshrl.u32 %v725, 7
  %v727 = vsub.s32 5, %v726
  %v728 = vrot.slane %v670, %v727
  %v729 = vlaneseq
  %v730 = vshrl.u32 %v729, 7
  %v731 = vsub.s32 6, %v730
  %v732 = vrot.slane %v670, %v731
  %v733 = vlaneseq
  %v734 = vshrl.u32 %v733, 7
  %v735 = vsub.s32 7, %v734
  %v736 = vrot.slane %v670, %v735
  %v753 = vsub.f32 %v528, %v676
  %v754 = vsub.f32 %v530, %v680
  %v755 = vsub.f32 %v532, %v684
  %v756 = vsub.f32 %v534, %v688
  %v757 = vsub.f32 %v536, %v692
  %v758 = vsub.f32 %v538, %v696
  %v759 = vsub.f32 %v540, %v700
  %v760 = vsub.f32 %v542, %v704
  %v761 = vsub.f32 %v544, %v708
  %v762 = vsub.f32 %v546, %v712
  %v763 = vsub.f32 %v548, %v716
  %v764 = vsub.f32 %v550, %v720
  %v765 = vsub.f32 %v552, %v724
  %v766 = vsub.f32 %v554, %v728
  %v767 = vsub.f32 %v556, %v732
  %v768 = vsub.f32 %v558, %v736
  %v769 = vmul.f32 %v753, 1.442695
  %v770 = vpow.pop %v769
  %v771 = vmul.f32 %v754, 1.442695
  %v772 = vpow.pop %v771
  %v773 = vmul.f32 %v755, 1.442695
  %v774 = vpow.pop %v773
  %v775 = vmul.f32 %v756, 1.442695
  %v776 = vpow.pop %v775
  %v777 = vmul.f32 %v757, 1.442695
  %v778 = vpow.pop %v777
  %v779 = vmul.f32 %v758, 1.442695
  %v780 = vpow.pop %v779
  %v781 = vmul.f32 %v759, 1.442695
  %v782 = vpow.pop %v781
  %v783 = vmul.f32 %v760, 1.442695
  %v784 = vpow.pop %v783
  %v785 = vmul.f32 %v761, 1.442695
  %v786 = vpow.pop %v785
  %v787 = vmul.f32 %v762, 1.442695
  %v788 = vpow.pop %v787
  %v789 = vmul.f32 %v763, 1.442695
  %v790 = vpow.pop %v789
  %v791 = vmul.f32 %v764, 1.442695
  %v792 = vpow.pop %v791
  %v793 = vmul.f32 %v765, 1.442695
  %v794 = vpow.pop %v793
  %v795 = vmul.f32 %v766, 1.442695
  %v796 = vpow.pop %v795
  %v797 = vmul.f32 %v767, 1.442695
  %v798 = vpow.pop %v797
  %v799 = vmul.f32 %v768, 1.442695
  %v800 = vpow.pop %v799
  %817 = vset.pattern.permute.xlu0 0
  %818 = vperm.xlu0 %817, %v770
  %v819 = vpop.permute.xlu0 %818
  %820 = vset.pattern.permute.xlu0 0
  %821 = vperm.xlu0 %820, %v772
  %v822 = vpop.permute.xlu0 %821
  %823 = vset.pattern.permute.xlu0 0
  %824 = vperm.xlu0 %823, %v774
  %v825 = vpop.permute.xlu0 %824
  %826 = vset.pattern.permute.xlu0 0
  %827 = vperm.xlu0 %826, %v776
  %v828 = vpop.permute.xlu0 %827
  %829 = vset.pattern.permute.xlu0 0
  %830 = vperm.xlu0 %829, %v778
  %v831 = vpop.permute.xlu0 %830
  %832 = vset.pattern.permute.xlu0 0
  %833 = vperm.xlu0 %832, %v780
  %v834 = vpop.permute.xlu0 %833
  %835 = vset.pattern.permute.xlu0 0
  %836 = vperm.xlu0 %835, %v782
  %v837 = vpop.permute.xlu0 %836
  %838 = vset.pattern.permute.xlu0 0
  %839 = vperm.xlu0 %838, %v784
  %v840 = vpop.permute.xlu0 %839
  %841 = vset.pattern.permute.xlu0 0
  %842 = vperm.xlu0 %841, %v786
  %v843 = vpop.permute.xlu0 %842
  %844 = vset.pattern.permute.xlu0 0
  %845 = vperm.xlu0 %844, %v788
  %v846 = vpop.permute.xlu0 %845
  %847 = vset.pattern.permute.xlu0 0
  %848 = vperm.xlu0 %847, %v790
  %v849 = vpop.permute.xlu0 %848
  %850 = vset.pattern.permute.xlu0 0
  %851 = vperm.xlu0 %850, %v792
  %v852 = vpop.permute.xlu0 %851
  %853 = vset.pattern.permute.xlu0 0
  %854 = vperm.xlu0 %853, %v794
  %v855 = vpop.permute.xlu0 %854
  %856 = vset.pattern.permute.xlu0 0
  %857 = vperm.xlu0 %856, %v796
  %v858 = vpop.permute.xlu0 %857
  %859 = vset.pattern.permute.xlu0 0
  %860 = vperm.xlu0 %859, %v798
  %v861 = vpop.permute.xlu0 %860
  %862 = vset.pattern.permute.xlu0 0
  %863 = vperm.xlu0 %862, %v800
  %v864 = vpop.permute.xlu0 %863
  %v865 = vlaneseq
  %v866 = vshrl.u32 %v865, 7
  %v867 = vsub.s32 %v576, %v866
  %v868 = vrot.slane %v819, %v867
  %v869 = vlaneseq
  %v870 = vshrl.u32 %v869, 7
  %v871 = vsub.s32 %v576, %v870
  %v872 = vrot.slane %v822, %v871
  %v873 = vlaneseq
  %v874 = vshrl.u32 %v873, 7
  %v875 = vsub.s32 %v576, %v874
  %v876 = vrot.slane %v825, %v875
  %v877 = vlaneseq
  %v878 = vshrl.u32 %v877, 7
  %v879 = vsub.s32 %v576, %v878
  %v880 = vrot.slane %v828, %v879
  %v881 = vlaneseq
  %v882 = vshrl.u32 %v881, 7
  %v883 = vsub.s32 %v576, %v882
  %v884 = vrot.slane %v831, %v883
  %v885 = vlaneseq
  %v886 = vshrl.u32 %v885, 7
  %v887 = vsub.s32 %v576, %v886
  %v888 = vrot.slane %v834, %v887
  %v889 = vlaneseq
  %v890 = vshrl.u32 %v889, 7
  %v891 = vsub.s32 %v576, %v890
  %v892 = vrot.slane %v837, %v891
  %v893 = vlaneseq
  %v894 = vshrl.u32 %v893, 7
  %v895 = vsub.s32 %v576, %v894
  %v896 = vrot.slane %v840, %v895
  %v897 = vlaneseq
  %v898 = vshrl.u32 %v897, 7
  %v899 = vsub.s32 %v576, %v898
  %v900 = vrot.slane %v843, %v899
  %v901 = vlaneseq
  %v902 = vshrl.u32 %v901, 7
  %v903 = vsub.s32 %v576, %v902
  %v904 = vrot.slane %v846, %v903
  %v905 = vlaneseq
  %v906 = vshrl.u32 %v905, 7
  %v907 = vsub.s32 %v576, %v906
  %v908 = vrot.slane %v849, %v907
  %v909 = vlaneseq
  %v910 = vshrl.u32 %v909, 7
  %v911 = vsub.s32 %v576, %v910
  %v912 = vrot.slane %v852, %v911
  %v913 = vlaneseq
  %v914 = vshrl.u32 %v913, 7
  %v915 = vsub.s32 %v576, %v914
  %v916 = vrot.slane %v855, %v915
  %v917 = vlaneseq
  %v918 = vshrl.u32 %v917, 7
  %v919 = vsub.s32 %v576, %v918
  %v920 = vrot.slane %v858, %v919
  %v921 = vlaneseq
  %v922 = vshrl.u32 %v921, 7
  %v923 = vsub.s32 %v576, %v922
  %v924 = vrot.slane %v861, %v923
  %v925 = vlaneseq
  %v926 = vshrl.u32 %v925, 7
  %v927 = vsub.s32 %v576, %v926
  %v928 = vrot.slane %v864, %v927
  %v929 = vsel %vm641, %v872, %v868
  %v930 = vsel %vm643, %v876, %v929
  %v931 = vsel %vm645, %v880, %v930
  %v932 = vsel %vm647, %v884, %v931
  %v933 = vsel %vm649, %v888, %v932
  %v934 = vsel %vm651, %v892, %v933
  %v935 = vsel %vm653, %v896, %v934
  %v936 = vsel %vm641, %v904, %v900
  %v937 = vsel %vm643, %v908, %v936
  %v938 = vsel %vm645, %v912, %v937
  %v939 = vsel %vm647, %v916, %v938
  %v940 = vsel %vm649, %v920, %v939
  %v941 = vsel %vm651, %v924, %v940
  %v942 = vsel %vm653, %v928, %v941
  %v945 = vsel %vm664, %v935, 0.0
  %946 = vadd.xlane.f32.xlu0 %v945
  %v947 = vpop.xlane.xlu0 %946
  %v948 = vsel %vm664, %v942, 0.0
  %949 = vadd.xlane.f32.xlu0 %v948
  %v950 = vpop.xlane.xlu0 %949
  %v951 = vrcp.pop %v947
  %v952 = vrcp.pop %v950
  %v955 = vlaneseq
  %v956 = vshrl.u32 %v955, 7
  %v957 = vsub.s32 0, %v956
  %v958 = vrot.slane %v951, %v957
  %v959 = vlaneseq
  %v960 = vshrl.u32 %v959, 7
  %v961 = vsub.s32 1, %v960
  %v962 = vrot.slane %v951, %v961
  %v963 = vlaneseq
  %v964 = vshrl.u32 %v963, 7
  %v965 = vsub.s32 2, %v964
  %v966 = vrot.slane %v951, %v965
  %v967 = vlaneseq
  %v968 = vshrl.u32 %v967, 7
  %v969 = vsub.s32 3, %v968
  %v970 = vrot.slane %v951, %v969
  %v971 = vlaneseq
  %v972 = vshrl.u32 %v971, 7
  %v973 = vsub.s32 4, %v972
  %v974 = vrot.slane %v951, %v973
  %v975 = vlaneseq
  %v976 = vshrl.u32 %v975, 7
  %v977 = vsub.s32 5, %v976
  %v978 = vrot.slane %v951, %v977
  %v979 = vlaneseq
  %v980 = vshrl.u32 %v979, 7
  %v981 = vsub.s32 6, %v980
  %v982 = vrot.slane %v951, %v981
  %v983 = vlaneseq
  %v984 = vshrl.u32 %v983, 7
  %v985 = vsub.s32 7, %v984
  %v986 = vrot.slane %v951, %v985
  %v987 = vlaneseq
  %v988 = vshrl.u32 %v987, 7
  %v989 = vsub.s32 0, %v988
  %v990 = vrot.slane %v952, %v989
  %v991 = vlaneseq
  %v992 = vshrl.u32 %v991, 7
  %v993 = vsub.s32 1, %v992
  %v994 = vrot.slane %v952, %v993
  %v995 = vlaneseq
  %v996 = vshrl.u32 %v995, 7
  %v997 = vsub.s32 2, %v996
  %v998 = vrot.slane %v952, %v997
  %v999 = vlaneseq
  %v1000 = vshrl.u32 %v999, 7
  %v1001 = vsub.s32 3, %v1000
  %v1002 = vrot.slane %v952, %v1001
  %v1003 = vlaneseq
  %v1004 = vshrl.u32 %v1003, 7
  %v1005 = vsub.s32 4, %v1004
  %v1006 = vrot.slane %v952, %v1005
  %v1007 = vlaneseq
  %v1008 = vshrl.u32 %v1007, 7
  %v1009 = vsub.s32 5, %v1008
  %v1010 = vrot.slane %v952, %v1009
  %v1011 = vlaneseq
  %v1012 = vshrl.u32 %v1011, 7
  %v1013 = vsub.s32 6, %v1012
  %v1014 = vrot.slane %v952, %v1013
  %v1015 = vlaneseq
  %v1016 = vshrl.u32 %v1015, 7
  %v1017 = vsub.s32 7, %v1016
  %v1018 = vrot.slane %v952, %v1017
  %v1035 = vmul.f32 %v770, %v958
  %v1036 = vmul.f32 %v772, %v962
  %v1037 = vmul.f32 %v774, %v966
  %v1038 = vmul.f32 %v776, %v970
  %v1039 = vmul.f32 %v778, %v974
  %v1040 = vmul.f32 %v780, %v978
  %v1041 = vmul.f32 %v782, %v982
  %v1042 = vmul.f32 %v784, %v986
  %v1043 = vmul.f32 %v786, %v990
  %v1044 = vmul.f32 %v788, %v994
  %v1045 = vmul.f32 %v790, %v998
  %v1046 = vmul.f32 %v792, %v1002
  %v1047 = vmul.f32 %v794, %v1006
  %v1048 = vmul.f32 %v796, %v1010
  %v1049 = vmul.f32 %v798, %v1014
  %v1050 = vmul.f32 %v800, %v1018
  %1067 = vset.pattern.permute.xlu0 0
  %1068 = vperm.xlu0 %1067, %v1035
  %v1069 = vpop.permute.xlu0 %1068
  %1070 = vset.pattern.permute.xlu0 0
  %1071 = vperm.xlu0 %1070, %v1036
  %v1072 = vpop.permute.xlu0 %1071
  %1073 = vset.pattern.permute.xlu0 0
  %1074 = vperm.xlu0 %1073, %v1037
  %v1075 = vpop.permute.xlu0 %1074
  %1076 = vset.pattern.permute.xlu0 0
  %1077 = vperm.xlu0 %1076, %v1038
  %v1078 = vpop.permute.xlu0 %1077
  %1079 = vset.pattern.permute.xlu0 0
  %1080 = vperm.xlu0 %1079, %v1039
  %v1081 = vpop.permute.xlu0 %1080
  %1082 = vset.pattern.permute.xlu0 0
  %1083 = vperm.xlu0 %1082, %v1040
  %v1084 = vpop.permute.xlu0 %1083
  %1085 = vset.pattern.permute.xlu0 0
  %1086 = vperm.xlu0 %1085, %v1041
  %v1087 = vpop.permute.xlu0 %1086
  %1088 = vset.pattern.permute.xlu0 0
  %1089 = vperm.xlu0 %1088, %v1042
  %v1090 = vpop.permute.xlu0 %1089
  %1091 = vset.pattern.permute.xlu0 0
  %1092 = vperm.xlu0 %1091, %v1043
  %v1093 = vpop.permute.xlu0 %1092
  %1094 = vset.pattern.permute.xlu0 0
  %1095 = vperm.xlu0 %1094, %v1044
  %v1096 = vpop.permute.xlu0 %1095
  %1097 = vset.pattern.permute.xlu0 0
  %1098 = vperm.xlu0 %1097, %v1045
  %v1099 = vpop.permute.xlu0 %1098
  %1100 = vset.pattern.permute.xlu0 0
  %1101 = vperm.xlu0 %1100, %v1046
  %v1102 = vpop.permute.xlu0 %1101
  %1103 = vset.pattern.permute.xlu0 0
  %1104 = vperm.xlu0 %1103, %v1047
  %v1105 = vpop.permute.xlu0 %1104
  %1106 = vset.pattern.permute.xlu0 0
  %1107 = vperm.xlu0 %1106, %v1048
  %v1108 = vpop.permute.xlu0 %1107
  %1109 = vset.pattern.permute.xlu0 0
  %1110 = vperm.xlu0 %1109, %v1049
  %v1111 = vpop.permute.xlu0 %1110
  %1112 = vset.pattern.permute.xlu0 0
  %1113 = vperm.xlu0 %1112, %v1050
  %v1114 = vpop.permute.xlu0 %1113
  %v1115 = vlaneseq
  %v1116 = vshrl.u32 %v1115, 7
  %v1117 = vsub.s32 %v576, %v1116
  %v1118 = vrot.slane %v1069, %v1117
  %v1119 = vlaneseq
  %v1120 = vshrl.u32 %v1119, 7
  %v1121 = vsub.s32 %v576, %v1120
  %v1122 = vrot.slane %v1072, %v1121
  %v1123 = vlaneseq
  %v1124 = vshrl.u32 %v1123, 7
  %v1125 = vsub.s32 %v576, %v1124
  %v1126 = vrot.slane %v1075, %v1125
  %v1127 = vlaneseq
  %v1128 = vshrl.u32 %v1127, 7
  %v1129 = vsub.s32 %v576, %v1128
  %v1130 = vrot.slane %v1078, %v1129
  %v1131 = vlaneseq
  %v1132 = vshrl.u32 %v1131, 7
  %v1133 = vsub.s32 %v576, %v1132
  %v1134 = vrot.slane %v1081, %v1133
  %v1135 = vlaneseq
  %v1136 = vshrl.u32 %v1135, 7
  %v1137 = vsub.s32 %v576, %v1136
  %v1138 = vrot.slane %v1084, %v1137
  %v1139 = vlaneseq
  %v1140 = vshrl.u32 %v1139, 7
  %v1141 = vsub.s32 %v576, %v1140
  %v1142 = vrot.slane %v1087, %v1141
  %v1143 = vlaneseq
  %v1144 = vshrl.u32 %v1143, 7
  %v1145 = vsub.s32 %v576, %v1144
  %v1146 = vrot.slane %v1090, %v1145
  %v1147 = vlaneseq
  %v1148 = vshrl.u32 %v1147, 7
  %v1149 = vsub.s32 %v576, %v1148
  %v1150 = vrot.slane %v1093, %v1149
  %v1151 = vlaneseq
  %v1152 = vshrl.u32 %v1151, 7
  %v1153 = vsub.s32 %v576, %v1152
  %v1154 = vrot.slane %v1096, %v1153
  %v1155 = vlaneseq
  %v1156 = vshrl.u32 %v1155, 7
  %v1157 = vsub.s32 %v576, %v1156
  %v1158 = vrot.slane %v1099, %v1157
  %v1159 = vlaneseq
  %v1160 = vshrl.u32 %v1159, 7
  %v1161 = vsub.s32 %v576, %v1160
  %v1162 = vrot.slane %v1102, %v1161
  %v1163 = vlaneseq
  %v1164 = vshrl.u32 %v1163, 7
  %v1165 = vsub.s32 %v576, %v1164
  %v1166 = vrot.slane %v1105, %v1165
  %v1167 = vlaneseq
  %v1168 = vshrl.u32 %v1167, 7
  %v1169 = vsub.s32 %v576, %v1168
  %v1170 = vrot.slane %v1108, %v1169
  %v1171 = vlaneseq
  %v1172 = vshrl.u32 %v1171, 7
  %v1173 = vsub.s32 %v576, %v1172
  %v1174 = vrot.slane %v1111, %v1173
  %v1175 = vlaneseq
  %v1176 = vshrl.u32 %v1175, 7
  %v1177 = vsub.s32 %v576, %v1176
  %v1178 = vrot.slane %v1114, %v1177
  %v1179 = vsel %vm641, %v1122, %v1118
  %v1180 = vsel %vm643, %v1126, %v1179
  %v1181 = vsel %vm645, %v1130, %v1180
  %v1182 = vsel %vm647, %v1134, %v1181
  %v1183 = vsel %vm649, %v1138, %v1182
  %v1184 = vsel %vm651, %v1142, %v1183
  %v1185 = vsel %vm653, %v1146, %v1184
  %v1186 = vsel %vm641, %v1154, %v1150
  %v1187 = vsel %vm643, %v1158, %v1186
  %v1188 = vsel %vm645, %v1162, %v1187
  %v1189 = vsel %vm647, %v1166, %v1188
  %v1190 = vsel %vm649, %v1170, %v1189
  %v1191 = vsel %vm651, %v1174, %v1190
  %v1192 = vsel %vm653, %v1178, %v1191
  %1195 = vst.msk [vmem:[%s6] sm:$0xff] %vm664, %v1185
  %1196 = vst.msk [vmem:[%s6 + $0x8] sm:$0xff] %vm664, %v1192
  // Predicated region
  $region26: #{tpu_custom_call.1} parent=0 // pred_check
    _
  $region27: #{tpu_custom_call.1} parent=0 // pred_check_branch
    %1198 = sbr.rel (0) target = $region29
  $region28: #{tpu_custom_call.1} parent=0 // pred_region
    _
  $region29: #{tpu_custom_call.1} parent=0 // pred_fallthru
    _
  // Predicated region
  $region30: #{tpu_custom_call.1} parent=0 // pred_check
    _
  $region31: #{tpu_custom_call.1} parent=0 // pred_check_branch
    %1200 = sbr.rel (0) target = $region33
  $region32: #{tpu_custom_call.1} parent=0 // pred_region
    _
  $region33: #{tpu_custom_call.1} parent=0 // pred_fallthru
    _

</llo_original>
